<compile_context>
chip_gen: v5e
topology: v5e:2x2
jax: 0.10.0
libtpu: 0.0.40
codegen_flags: <defaults>
</compile_context>

<pallas_src>
import jax
import jax.numpy as jnp
from jax.experimental import pallas as pl
from jax.experimental.pallas import tpu as pltpu

_LANE = 128
_SUBLANE_F32 = 8
# Per-step VMEM working-set target: keeps every pipelined buffer ~1-4 MiB
# (>=512-lane tiles already reach ~85% of the HBM roofline, bigger buys nothing).
_TILE_WORKSET_BYTES = 8 * 1024 * 1024
# Aim for at least this many total grid steps so the DMA double-buffer reaches
# steady state; each step costs ~0.35us fixed overhead, so don't go far past it.
_MIN_TOTAL_STEPS = 8


def _round_up(x, m):
    return ((x + m - 1) // m) * m


def _glu_kernel(x_ref, w_ref, b_ref, o_ref):
    # x_ref: (1, C_in, ts)   one batch element, one spatial tile
    # w_ref: (2*Cp, C_in)    [w_map(padded) ; w_gate(padded)], Cp = round_up(C_out, 8)
    # b_ref: (2*Cp, 1)       [b_map(padded) ; b_gate(padded)]
    # o_ref: (1, C_out, ts)
    c_out = o_ref.shape[1]
    c_pad = w_ref.shape[0] // 2
    x = x_ref[0]                                               # (C_in, ts)
    acc = jnp.dot(w_ref[...], x, preferred_element_type=jnp.float32)
    acc = acc + b_ref[...].astype(jnp.float32)                 # lane broadcast
    # Sublane-tile-aligned split (c_pad is a multiple of 8 = f32 sublane tile),
    # so neither slice forces a VMEM retile.
    y = acc[:c_pad]                                            # map branch
    g = acc[c_pad:]                                            # gate branch
    out = y * jax.nn.sigmoid(g)                                # (c_pad, ts), f32
    if c_out == c_pad:
        o_ref[0] = out.astype(o_ref.dtype)
    else:
        # Leading-aligned slice (starts at sublane 0); padded rows are zeros.
        o_ref[0] = out[:c_out].astype(o_ref.dtype)


def _vmem_capacity_bytes():
    cap = 64 * 1024 * 1024  # conservative default (v7x per-TC physical VMEM)
    try:
        info = pltpu.get_tpu_info()
        cap = int(getattr(info, "vmem_capacity_bytes", cap))
    except Exception:
        pass
    return max(16 * 1024 * 1024, min(cap, 128 * 1024 * 1024))


def _per_column_bytes(c_in, c_pad, in_itemsize, out_itemsize):
    """VMEM bytes per lane-column of a spatial tile (pipelined I/O + f32 temps)."""
    return (2 * c_in * in_itemsize          # x tile, double-buffered
            + 2 * c_pad * out_itemsize      # out tile, double-buffered (sublane-padded)
            + 4 * (2 * c_pad)               # f32 accumulator (2*Cp, ts)
            + 4 * (2 * c_pad))              # sigmoid / product temporaries


def _pick_spatial_tile(hw, n_batch, per_col_bytes):
    """Pick the spatial (lane) tile size.

    Lexicographic preference:
      1. a 128-multiple divisor of H*W   -> no wrapper-side pad / output slice
      2. at least _MIN_TOTAL_STEPS steps -> DMA pipeline saturation
      3. an even total step count        -> both v7x TensorCores stay busy
      4. the largest tile                -> fewest per-step overheads (v5e)
    subject to the per-step working set staying under _TILE_WORKSET_BYTES.
    """
    ts_cap = max(_LANE, (_TILE_WORKSET_BYTES // per_col_bytes) // _LANE * _LANE)
    upper = min(ts_cap, _round_up(hw, _LANE))
    candidates = range(_LANE, upper + 1, _LANE)

    def key(ts):
        hw_pad = _round_up(hw, ts)
        total = n_batch * (hw_pad // ts)
        return (hw_pad == hw,                   # no padding needed
                min(total, _MIN_TOTAL_STEPS),   # enough pipeline steps
                total % 2 == 0,                 # even split across 2 TCs
                ts)                             # then: as large as possible

    return max(candidates, key=key)


def glu2d_pallas(x_nchw, w_map, b_map, w_gate, b_gate):
    """GLU2d forward.

    Args:
      x_nchw: (N, C_in, H, W)
      w_map, w_gate: (C_out, C_in) 1x1-conv weights (kernel dims squeezed)
      b_map, b_gate: (C_out,) biases
    Returns:
      (N, C_out, H, W)
    """
    N, C_in, H, W = x_nchw.shape
    C_out = w_map.shape[0]
    HW = H * W
    in_is = jnp.dtype(x_nchw.dtype).itemsize
    out_is = in_is
    w_is = jnp.dtype(w_map.dtype).itemsize

    # Pad C_out to the f32 sublane tile so the fused accumulator splits cleanly.
    c_pad = _round_up(C_out, _SUBLANE_F32)

    per_col = _per_column_bytes(C_in, c_pad, in_is, out_is)
    ts = _pick_spatial_tile(HW, N, per_col)
    hw_pad = _round_up(HW, ts)
    n_s = hw_pad // ts

    # NCHW -> (N, C_in, H*W): contiguous reshape, no HBM data movement.
    x3 = x_nchw.reshape(N, C_in, HW)
    if hw_pad != HW:
        # Only reached when no 128-multiple divisor of H*W fits the budget.
        # TODO(synk): handle the ragged tail in-kernel (masked store) instead.
        x3 = jnp.pad(x3, ((0, 0), (0, 0), (0, hw_pad - HW)))

    # Fused, sublane-padded weights / biases: one (2*c_pad, C_in) matmul per tile.
    def pad_rows(a):
        return jnp.pad(a, ((0, c_pad - C_out),) + ((0, 0),) * (a.ndim - 1))

    w_cat = jnp.concatenate([pad_rows(w_map), pad_rows(w_gate)], axis=0)
    b_cat = jnp.concatenate([pad_rows(b_map.reshape(C_out, 1)),
                             pad_rows(b_gate.reshape(C_out, 1))], axis=0)

    # VMEM actually needed: pipelined tiles + f32 temps + (double-buffered)
    # weights/bias, +25% slack.  Floor at the 16 MiB default; cap well below
    # physical VMEM so XLA keeps its own scratch.
    cap = _vmem_capacity_bytes()
    w_bytes = 2 * c_pad * _round_up(C_in, _LANE) * w_is
    b_bytes = 2 * c_pad * _LANE * w_is
    need = per_col * ts + 2 * (w_bytes + b_bytes)
    vmem_limit = min(max(int(need * 1.25) + (2 << 20), 16 << 20), (3 * cap) // 4)

    out3 = pl.pallas_call(
        _glu_kernel,
        out_shape=jax.ShapeDtypeStruct((N, C_out, hw_pad), x_nchw.dtype),
        grid_spec=pltpu.PrefetchScalarGridSpec(
            num_scalar_prefetch=0,
            grid=(N, n_s),
            in_specs=[
                pl.BlockSpec((1, C_in, ts), lambda n, s: (n, 0, s)),
                # Grid-invariant weights/bias stay resident across the grid.
                pl.BlockSpec((2 * c_pad, C_in), lambda n, s: (0, 0)),
                pl.BlockSpec((2 * c_pad, 1), lambda n, s: (0, 0)),
            ],
            out_specs=pl.BlockSpec((1, C_out, ts), lambda n, s: (n, 0, s)),
        ),
        compiler_params=pltpu.CompilerParams(
            dimension_semantics=("parallel", "parallel"),
            vmem_limit_bytes=vmem_limit,
        ),
    )(x3, w_cat, b_cat)

    if hw_pad != HW:
        out3 = out3[:, :, :HW]
    return out3.reshape(N, C_out, H, W)     # free reshape, already NCHW


def _reference(x_nchw, w_map, b_map, w_gate, b_gate):
    # Pure-JAX reference of the same math (1x1 conv == channel contraction).
    y = jnp.einsum('oc,nchw->nohw', w_map, x_nchw) + b_map[None, :, None, None]
    g = jnp.einsum('oc,nchw->nohw', w_gate, x_nchw) + b_gate[None, :, None, None]
    return y * jax.nn.sigmoid(g)


if __name__ == "__main__":
    key = jax.random.PRNGKey(0)
    N, C_in, C_out, H, W = 2, 4, 4, 16, 16

    k_x, k_wm, k_bm, k_wg, k_bg = jax.random.split(key, 5)
    x = jax.random.normal(k_x, (N, C_in, H, W), dtype=jnp.float32)

    # Deterministic init mimicking PyTorch Conv2d default: U(-1/sqrt(fan_in), 1/sqrt(fan_in))
    bound = 1.0 / (C_in ** 0.5)
    w_map = jax.random.uniform(k_wm, (C_out, C_in), minval=-bound, maxval=bound,
                               dtype=jnp.float32)
    b_map = jax.random.uniform(k_bm, (C_out,), minval=-bound, maxval=bound,
                               dtype=jnp.float32)
    w_gate = jax.random.uniform(k_wg, (C_out, C_in), minval=-bound, maxval=bound,
                                dtype=jnp.float32)
    b_gate = jax.random.uniform(k_bg, (C_out,), minval=-bound, maxval=bound,
                                dtype=jnp.float32)

    out = glu2d_pallas(x, w_map, b_map, w_gate, b_gate)
    out = jax.block_until_ready(out)

    ref = _reference(x, w_map, b_map, w_gate, b_gate)
    assert out.shape == (N, C_out, H, W), out.shape
    assert jnp.allclose(out, ref, atol=1e-5, rtol=1e-5), "mismatch vs reference"

    print("KERNEL_OK")
</pallas_src>

<mosaic_0001>
module attributes {stable_mosaic.version = 11 : i64} {
  func.func @_glu_kernel(%arg0: i32, %arg1: i32, %arg2: memref<1x4x128xf32, #tpu.memory_space<vmem>>, %arg3: memref<16x4xf32, #tpu.memory_space<vmem>>, %arg4: memref<16x1xf32, #tpu.memory_space<vmem>>, %arg5: memref<1x4x128xf32, #tpu.memory_space<vmem>>) attributes {dimension_semantics = [#tpu.dimension_semantics<parallel>, #tpu.dimension_semantics<parallel>], iteration_bounds = array<i64: 2, 2>, scalar_prefetch = 0 : i64, scratch_operands = 0 : i64, tpu.core_type = #tpu.core_type<tc>, window_params = [{transform_indices = @transform_0, window_bounds = array<i64: 1, 4, 128>}, {pipeline_mode = #tpu.pipeline_mode<synchronous>, transform_indices = @transform_1, window_bounds = array<i64: 16, 4>}, {pipeline_mode = #tpu.pipeline_mode<synchronous>, transform_indices = @transform_2, window_bounds = array<i64: 16, 1>}, {transform_indices = @transform_3, window_bounds = array<i64: 1, 4, 128>}]} {
    %c0 = arith.constant 0 : index
    %c0_0 = arith.constant 0 : index
    %c0_1 = arith.constant 0 : index
    %0 = vector.load %arg2[%c0, %c0_0, %c0_1] : memref<1x4x128xf32, #tpu.memory_space<vmem>>, vector<1x4x128xf32>
    %1 = vector.shape_cast %0 : vector<1x4x128xf32> to vector<4x128xf32>
    %c0_2 = arith.constant 0 : index
    %c0_3 = arith.constant 0 : index
    %2 = vector.load %arg3[%c0_2, %c0_3] : memref<16x4xf32, #tpu.memory_space<vmem>>, vector<16x4xf32>
    %cst = arith.constant dense<0.000000e+00> : vector<16x128xf32>
    %3 = tpu.matmul %2, %1, %cst {dimension_numbers = #tpu.dot_dimension_numbers<[1], [0], [0], [1], [0, 0, 1, 1], [], []>} : vector<16x4xf32>, vector<4x128xf32>, vector<16x128xf32> -> vector<16x128xf32>
    %c0_4 = arith.constant 0 : index
    %c0_5 = arith.constant 0 : index
    %4 = vector.load %arg4[%c0_4, %c0_5] : memref<16x1xf32, #tpu.memory_space<vmem>>, vector<16x1xf32>
    %5 = vector.broadcast %4 : vector<16x1xf32> to vector<16x128xf32>
    %6 = arith.addf %3, %5 : vector<16x128xf32>
    %7 = vector.extract_strided_slice %6 {offsets = [0, 0], sizes = [8, 128], strides = [1, 1]} : vector<16x128xf32> to vector<8x128xf32>
    %8 = vector.extract_strided_slice %6 {offsets = [8, 0], sizes = [8, 128], strides = [1, 1]} : vector<16x128xf32> to vector<8x128xf32>
    %9 = arith.negf %8 : vector<8x128xf32>
    %10 = math.exp %9 : vector<8x128xf32>
    %cst_6 = arith.constant 1.000000e+00 : f32
    %11 = vector.broadcast %cst_6 : f32 to vector<8x128xf32>
    %12 = arith.addf %11, %10 : vector<8x128xf32>
    %13 = arith.divf %11, %12 : vector<8x128xf32>
    %14 = arith.mulf %7, %13 : vector<8x128xf32>
    %15 = vector.extract_strided_slice %14 {offsets = [0, 0], sizes = [4, 128], strides = [1, 1]} : vector<8x128xf32> to vector<4x128xf32>
    %c0_7 = arith.constant 0 : index
    %c0_8 = arith.constant 0 : index
    %c0_9 = arith.constant 0 : index
    %16 = vector.load %arg5[%c0_7, %c0_8, %c0_9] : memref<1x4x128xf32, #tpu.memory_space<vmem>>, vector<1x4x128xf32>
    %17 = vector.shape_cast %16 : vector<1x4x128xf32> to vector<4x128xf32>
    %18 = vector.shape_cast %15 : vector<4x128xf32> to vector<1x4x128xf32>
    tpu.vector_store %arg5[%c0_7, %c0_8, %c0_9], %18 {strides = array<i32>} : memref<1x4x128xf32, #tpu.memory_space<vmem>>, vector<1x4x128xf32>,
    return
  }
  func.func @transform_0(%arg0: i32, %arg1: i32) -> (i32, i32, i32) {
    %c0_i32 = arith.constant 0 : i32
    %c0_i32_0 = arith.constant 0 : i32
    return %arg0, %c0_i32, %arg1 : i32, i32, i32
  }
  func.func @transform_1(%arg0: i32, %arg1: i32) -> (i32, i32) {
    %c0_i32 = arith.constant 0 : i32
    %c0_i32_0 = arith.constant 0 : i32
    %c0_i32_1 = arith.constant 0 : i32
    return %c0_i32, %c0_i32_0 : i32, i32
  }
  func.func @transform_2(%arg0: i32, %arg1: i32) -> (i32, i32) {
    %c0_i32 = arith.constant 0 : i32
    %c0_i32_0 = arith.constant 0 : i32
    %c0_i32_1 = arith.constant 0 : i32
    return %c0_i32, %c0_i32_0 : i32, i32
  }
  func.func @transform_3(%arg0: i32, %arg1: i32) -> (i32, i32, i32) {
    %c0_i32 = arith.constant 0 : i32
    %c0_i32_0 = arith.constant 0 : i32
    return %arg0, %c0_i32, %arg1 : i32, i32, i32
  }
}

</mosaic_0001>

<llo_original>
// kernel: tpu_custom_call.1
$region0: #{tpu_custom_call.1}
  #allocation0 [shape = 'u32[]', space=smem, size = 0x4, offset = 0x4, fixed_abs, tag = 'smem constant byte address 0x4 - core index']
  #allocation1 [shape = 'u32[72,128]{1,0:T(1,128)}', space=vmem, size = 0x9000, scoped, tag = 'internal scratch']
  %s0 = inlined_call_operand.vmem [shape: f32[2,4,256], index: 0, kind: input, shape index: {}]
  %s1 = inlined_call_operand.vmem [shape: f32[16,4], index: 1, kind: input, shape index: {}]
  %s2 = inlined_call_operand.vmem [shape: f32[16,1], index: 2, kind: input, shape index: {}]
  %s3 = inlined_call_operand.hbm [shape: f32[2,4,256], index: 3, kind: output, shape index: {}]
  %s4 = sld [smem:[#allocation0]]
  $region45: #{tpu_custom_call.1} parent=0
    _
  %s6 = ssub.s32 1, %s4
  %s7 = scalar_select 0, %s6, %s4
  $region1: #{tpu_custom_call.1} parent=0
    #allocation2 [shape = 'u8[4096]{0}', space=vmem, size = 0x1000, scoped, tag = 'output window, operand 0']
    #allocation3 [shape = 's32[2]{0}', space=sflag, size = 0x8, scoped, tag = 'scoped memory for tpu_custom_call.1']
    %8 = vsyncpa [#allocation3], 0
    %s9 = scalar_lea.sflag [#allocation3], 1
    %10 = vsyncpa %s9, 0
    loop: start=0, step=1, limit=6
    $region2: #{tpu_custom_call.1} parent=1 // loop_pre_header
      _
    $region3: #{tpu_custom_call.1} parent=1 // loop_header
      %s12 = sphi 0, %s16
      %p13 = scmp.ge.s32.totalorder %s12, 6
      %s19 = sphi 0, %s31
      %s20 = sphi 0, %s27
      %s21 = sphi 0, %s19
      %s22 = sphi 0, %s20
      %s23 = sphi 0, %s21
      %s24 = sphi 0, %s22
      %s36 = sphi 0, %s38
      %s39 = sphi 0, %s36
      %s40 = sphi 0, %s39
      %s56 = sphi 0, %s40
      %s60 = sphi 0, %s60
      %s62 = sphi 0, %s60
      %s63 = sphi 0, %s62
      %s77 = sphi 0, %s63
      %s81 = sphi 0, %s81
      %s83 = sphi 0, %s81
      %s84 = sphi 0, %s83
      %s98 = sphi 0, %s84
      %s106 = sphi 0, %s108
      %s109 = sphi 0, %s106
      %s110 = sphi 0, %s109
      %s126 = sphi 0, %s110
    $region4: #{tpu_custom_call.1} parent=1 // loop_header_branch
      %15 = sbr.rel (%p13) target = $region8
    $region5: #{tpu_custom_call.1} parent=1 // loop_body
      %s17 = ssub.s32 %s12, 1
      %s18 = ssub.s32 %s12, 2
      %s25 = sadd.s32 1, %s20
      %p26 = scmp.ge.s32.totalorder %s25, 2
      %s27 = scalar_select %p26, 0, %s25
      %s28 = sadd.s32 1, %s19
      %s29 = scalar_select %p26, %s28, %s19
      %p30 = scmp.ge.s32.totalorder %s29, 2
      %s31 = scalar_select %p30, 0, %s29
      %s32 = ssub.s32 %s19, %s31
      %s33 = ssub.s32 %s20, %s27
      %s34 = sor.u32 %s32, %s33
      %p35 = scmp.eq.s32.totalorder %s34, 0
      %s37 = sadd.s32 %s36, 1
      %s38 = scalar_select %p35, %s36, %s37
      %p41 = pneg %p35
      %p42 = scmp.eq.s32.totalorder %s12, 3
      %p43 = por %p41, %p42
      %p44 = scmp.ne.s32.totalorder %s36, %s39
      %p45 = scmp.eq.s32.totalorder %s12, 0
      %p46 = por %p44, %p45
      %p47 = scmp.ne.s32.totalorder %s36, %s39
      %p48 = scmp.eq.s32.totalorder %s17, 3
      %p49 = por %p47, %p48
      %p50 = scmp.ne.s32.totalorder %s39, %s40
      %p51 = scmp.eq.s32.totalorder %s17, 0
      %p52 = por %p50, %p51
      %p53 = scmp.ne.s32.totalorder %s39, %s40
      %p54 = scmp.eq.s32.totalorder %s18, 3
      %p55 = por %p53, %p54
      %p57 = scmp.ne.s32.totalorder %s40, %s56
      %p58 = scmp.eq.s32.totalorder %s18, 0
      %p59 = por %p57, %p58
      %s61 = sadd.s32 %s60, 1
      %p64 = scmp.eq.s32.totalorder %s12, 3
      %p65 = scmp.ne.s32.totalorder %s60, %s62
      %p66 = scmp.eq.s32.totalorder %s12, 0
      %p67 = por %p65, %p66
      %p68 = scmp.ne.s32.totalorder %s60, %s62
      %p69 = scmp.eq.s32.totalorder %s17, 3
      %p70 = por %p68, %p69
      %p71 = scmp.ne.s32.totalorder %s62, %s63
      %p72 = scmp.eq.s32.totalorder %s17, 0
      %p73 = por %p71, %p72
      %p74 = scmp.ne.s32.totalorder %s62, %s63
      %p75 = scmp.eq.s32.totalorder %s18, 3
      %p76 = por %p74, %p75
      %p78 = scmp.ne.s32.totalorder %s63, %s77
      %p79 = scmp.eq.s32.totalorder %s18, 0
      %p80 = por %p78, %p79
      %s82 = sadd.s32 %s81, 1
      %p85 = scmp.eq.s32.totalorder %s12, 3
      %p86 = scmp.ne.s32.totalorder %s81, %s83
      %p87 = scmp.eq.s32.totalorder %s12, 0
      %p88 = por %p86, %p87
      %p89 = scmp.ne.s32.totalorder %s81, %s83
      %p90 = scmp.eq.s32.totalorder %s17, 3
      %p91 = por %p89, %p90
      %p92 = scmp.ne.s32.totalorder %s83, %s84
      %p93 = scmp.eq.s32.totalorder %s17, 0
      %p94 = por %p92, %p93
      %p95 = scmp.ne.s32.totalorder %s83, %s84
      %p96 = scmp.eq.s32.totalorder %s18, 3
      %p97 = por %p95, %p96
      %p99 = scmp.ne.s32.totalorder %s84, %s98
      %p100 = scmp.eq.s32.totalorder %s18, 0
      %p101 = por %p99, %p100
      %s102 = ssub.s32 %s19, %s31
      %s103 = ssub.s32 %s20, %s27
      %s104 = sor.u32 %s102, %s103
      %p105 = scmp.eq.s32.totalorder %s104, 0
      %s107 = sadd.s32 %s106, 1
      %s108 = scalar_select %p105, %s106, %s107
      %p111 = pneg %p105
      %p112 = scmp.eq.s32.totalorder %s12, 3
      %p113 = por %p111, %p112
      %p114 = scmp.ne.s32.totalorder %s106, %s109
      %p115 = scmp.eq.s32.totalorder %s12, 0
      %p116 = por %p114, %p115
      %p117 = scmp.ne.s32.totalorder %s106, %s109
      %p118 = scmp.eq.s32.totalorder %s17, 3
      %p119 = por %p117, %p118
      %p120 = scmp.ne.s32.totalorder %s109, %s110
      %p121 = scmp.eq.s32.totalorder %s17, 0
      %p122 = por %p120, %p121
      %p123 = scmp.ne.s32.totalorder %s109, %s110
      %p124 = scmp.eq.s32.totalorder %s18, 3
      %p125 = por %p123, %p124
      %p127 = scmp.ne.s32.totalorder %s110, %s126
      %p128 = scmp.eq.s32.totalorder %s18, 0
      %p129 = por %p127, %p128
      %p130 = scmp.le.s32.totalorder 1, %s12
      %p131 = scmp.lt.s32.totalorder %s12, 5
      %p132 = pnand %p130, %p131
      %p133 = pneg %p132
      // Predicated region
      $region9: #{tpu_custom_call.1} parent=5 // pred_check
        _
      $region10: #{tpu_custom_call.1} parent=5 // pred_check_branch
        %135 = sbr.rel (%p132) target = $region12
      $region11: #{tpu_custom_call.1} parent=5 // pred_region
        %s136 = ssub.s32 %s12, 1
        // Predicated region
        $region13: #{tpu_custom_call.1} parent=11 // pred_check
          %p137 = pneg %p73
        $region14: #{tpu_custom_call.1} parent=11 // pred_check_branch
          %139 = sbr.rel (%p137) target = $region16
        $region15: #{tpu_custom_call.1} parent=11 // pred_region
          _
        $region16: #{tpu_custom_call.1} parent=11 // pred_fallthru
          _
        // Predicated region
        $region17: #{tpu_custom_call.1} parent=11 // pred_check
          %p140 = pneg %p94
        $region18: #{tpu_custom_call.1} parent=11 // pred_check_branch
          %142 = sbr.rel (%p140) target = $region20
        $region19: #{tpu_custom_call.1} parent=11 // pred_region
          _
        $region20: #{tpu_custom_call.1} parent=11 // pred_fallthru
          _
      $region12: #{tpu_custom_call.1} parent=5 // pred_fallthru
        _
      %p143 = scmp.lt.s32.totalorder %s12, 4
      // Predicated region
      $region21: #{tpu_custom_call.1} parent=5 // pred_check
        %p144 = pneg %p143
      $region22: #{tpu_custom_call.1} parent=5 // pred_check_branch
        %146 = sbr.rel (%p144) target = $region24
      $region23: #{tpu_custom_call.1} parent=5 // pred_region
        // Predicated region
        $region25: #{tpu_custom_call.1} parent=23 // pred_check
          %p147 = pneg %p46
        $region26: #{tpu_custom_call.1} parent=23 // pred_check_branch
          %149 = sbr.rel (%p147) target = $region28
        $region27: #{tpu_custom_call.1} parent=23 // pred_region
          %p150 = scmp.lt.s32.totalorder %s19, 1
          %s151 = scalar_select %p150, %s19, 1
          %p152 = scmp.lt.s32.totalorder %s20, 1
          %s153 = scalar_select %p152, %s20, 1
          %s154 = smul.addr %s151, 2
          %s155 = sadd.s32 %s153, %s154
          %s156 = smul.addr %s155, 4
          %s157 = scalar_lea.vmem %s0, %s156
        $region28: #{tpu_custom_call.1} parent=23 // pred_fallthru
          _
      $region24: #{tpu_custom_call.1} parent=5 // pred_fallthru
        _
      %p158 = scmp.le.s32.totalorder 1, %s12
      %p159 = scmp.lt.s32.totalorder %s12, 5
      %p160 = pnand %p158, %p159
      %p161 = pneg %p160
      // Predicated region
      $region29: #{tpu_custom_call.1} parent=5 // pred_check
        _
      $region30: #{tpu_custom_call.1} parent=5 // pred_check_branch
        %163 = sbr.rel (%p160) target = $region32
      $region31: #{tpu_custom_call.1} parent=5 // pred_region
        %s164 = ssub.s32 %s12, 1
        %p165 = scmp.lt.s32.totalorder %s21, 1
        %s166 = scalar_select %p165, %s21, 1
        %p167 = scmp.lt.s32.totalorder %s22, 1
        %s168 = scalar_select %p167, %s22, 1
        %s169 = smul.addr %s166, 2
        %s170 = sadd.s32 %s168, %s169
        %s171 = smul.addr %s170, 4
        %s172 = scalar_lea.vmem %s0, %s171
        %p173 = pneg %p52
        %p174 = pneg %p49
        %p175 = pneg %p73
        %p176 = pneg %p70
        %p177 = pneg %p94
        %p178 = pneg %p91
        %p179 = pneg %p122
        %p180 = pneg %p119
        %s181 = sand.u32 %s109, 1
        %s182 = scalar_lea.sflag [#allocation3], %s181
        %s183 = sand.u32 %s109, 1
        %s184 = smul.addr %s183, 4
        %s185 = scalar_lea.vmem [#allocation2], %s184
        %p186 = scmp.lt.s32.totalorder %s21, 1
        %s187 = scalar_select %p186, %s21, 1
        %p188 = scmp.lt.s32.totalorder %s22, 1
        %s189 = scalar_select %p188, %s22, 1
        %s190 = smul.addr %s187, 2
        %s191 = sadd.s32 %s189, %s190
        %s192 = smul.addr %s191, 4
        %s193 = scalar_lea.vmem %s0, %s192
        %v194 = vld [vmem:[%s193] sm:$0xf]
        %v195 = vld [vmem:[%s1] sm:$0xff]
        %v196 = vld [vmem:[%s1 + $0x8] sm:$0xff]
        %v197 = vld [vmem:[%s2] sm:$0xff]
        %v198 = vld [vmem:[%s2 + $0x8] sm:$0xff]
        %200 = vset.pattern.permute.xlu0 0
        %201 = vperm.xlu0 %200, %v197
        %v202 = vpop.permute.xlu0 %201
        %205 = vset.pattern.permute.xlu0 0
        %206 = vperm.xlu0 %205, %v198
        %v207 = vpop.permute.xlu0 %206
        %vm209 = vcmask 31744
        %v211 = vsel %vm209, %v195, 0
        %v214 = vsel %vm209, %v196, 0
        %vm216 = vcmask 1043456
        %v218 = vsel %vm216, %v194, 0
        %220 = vmatpush.msra.mxu0 0.0
        %221 = vmatpush.msra.mxu0 0.0
        %222 = vmatpush.msra.mxu0 0.0
        %223 = vmatpush.msra.mxu0 0.0
        %224 = vmatpush.msra.mxu0 0.0
        %225 = vmatpush.msra.mxu0 0.0
        %226 = vmatpush.msra.mxu0 0.0
        %227 = vmatpush.msra.mxu0 0.0
        %228 = vmatpush.msra.mxu0 0.0
        %229 = vmatpush.msra.mxu0 0.0
        %230 = vmatpush.msra.mxu0 0.0
        %231 = vmatpush.msra.mxu0 0.0
        %232 = vmatpush.msra.mxu0 0.0
        %233 = vmatpush.msra.mxu0 0.0
        %234 = vmatpush.msra.mxu0 0.0
        %235 = vmatpush.msra.mxu0 %v218
        %236 = vmatmul.f32.gmra.mxu0 %v211
        %v237 = vpop.f32.mrf.mxu0
        %v238 = vadd.f32 %v202, %v237
        %239 = vmatmul.f32.gmra.mxu0 %v214
        %v240 = vpop.f32.mrf.mxu0
        %v241 = vadd.f32 %v207, %v240
        %242 = vdwg.mxu0
        %v243 = vxor.u32 %v241, 2147483648
        %v244 = vmul.f32 %v243, 1.442695
        %v245 = vpow.pop %v244
        %v246 = vadd.f32 %v245, 1.0
        %v247 = vrcp.pop %v246
        %v248 = vmul.f32 %v246, %v247
        %v249 = vsub.f32 1.0, %v248
        %v250 = vmul.f32 %v247, %v249
        %v251 = vadd.f32 %v247, %v250
        %vm252 = vweird.f32 %v246
        %vm253 = vweird.f32 %v247
        %vm254 = vmor %vm252, %vm253
        %v255 = vsel %vm254, %v247, %v251
        %v256 = vand.u32 2147483647, %v246
        %vm257 = vcmp.eq.f32.partialorder %v256, 8.507059e+37
        %v258 = vand.u32 %v246, 2147483648
        %v259 = vor.u32 1.1754944e-38, %v258
        %v260 = vsel %vm257, %v259, %v255
        %v261 = vmul.f32 1.0, %v260
        %v262 = vmul.f32 %v238, %v261
        %263 = vst [vmem:[%s185] sm:$0xf] %v262
        %s264 = sand.u32 %s109, 1
        %s265 = scalar_lea.sflag [#allocation3], %s264
        %s266 = sand.u32 %s109, 1
        %s267 = smul.addr %s266, 4
        %s268 = scalar_lea.vmem [#allocation2], %s267
        // Predicated region
        $region33: #{tpu_custom_call.1} parent=31 // pred_check
          %p269 = pneg %p119
        $region34: #{tpu_custom_call.1} parent=31 // pred_check_branch
          %271 = sbr.rel (%p269) target = $region36
        $region35: #{tpu_custom_call.1} parent=31 // pred_region
          %273 = vsyncadd %s265, 0
          %s274 = smul.addr %s21, 2
          %s275 = sadd.s32 %s22, %s274
          %s276 = smul.addr %s275, 4
          %s277 = scalar_lea.hbm %s3, %s276
          %s279 = sshll.u32 %s268, 4
          %s280 = int_to_ptr.vmem [resolvable:$true] %s279
          %s281 = sshll.u32 %s277, 4
          %s282 = int_to_ptr.hbm [resolvable:$true] %s281
          %284 = dma.vmem_to_hbm [thread:$0]  %s280, 64, %s282, %s265
        $region36: #{tpu_custom_call.1} parent=31 // pred_fallthru
          _
      $region32: #{tpu_custom_call.1} parent=5 // pred_fallthru
        _
      %p285 = scmp.le.s32.totalorder 2, %s12
      // Predicated region
      $region37: #{tpu_custom_call.1} parent=5 // pred_check
        %p286 = pneg %p285
      $region38: #{tpu_custom_call.1} parent=5 // pred_check_branch
        %288 = sbr.rel (%p286) target = $region40
      $region39: #{tpu_custom_call.1} parent=5 // pred_region
        %s289 = ssub.s32 %s12, 2
        // Predicated region
        $region41: #{tpu_custom_call.1} parent=39 // pred_check
          %p290 = pneg %p125
        $region42: #{tpu_custom_call.1} parent=39 // pred_check_branch
          %292 = sbr.rel (%p290) target = $region44
        $region43: #{tpu_custom_call.1} parent=39 // pred_region
          %s293 = sand.u32 %s110, 1
          %s294 = scalar_lea.sflag [#allocation3], %s293
          %s295 = sand.u32 %s110, 1
          %s296 = smul.addr %s295, 4
          %s297 = scalar_lea.vmem [#allocation2], %s296
          %299 = dma.done %s294, 64
        $region44: #{tpu_custom_call.1} parent=39 // pred_fallthru
          _
      $region40: #{tpu_custom_call.1} parent=5 // pred_fallthru
        _
    $region6: #{tpu_custom_call.1} parent=1 // loop_footer
      %s16 = sadd.s32 1, %s12
    $region7: #{tpu_custom_call.1} parent=1 // loop_footer_branch
      %11 = sbr.rel target = $region3
    $region8: #{tpu_custom_call.1} parent=1 // loop_exit
      _
    %300 = vsyncpa [#allocation3], 1
    %s301 = scalar_lea.sflag [#allocation3], 1
    %302 = vsyncpa %s301, 1

</llo_original>
